<compile_context>
chip_gen: v6e
topology: v6e:2x2x1
jax: 0.10.0
libtpu: 0.0.40
codegen_flags: <defaults>
</compile_context>

<pallas_src>
import functools

import jax
import jax.numpy as jnp
from jax import lax
from jax.experimental import pallas as pl
from jax.experimental.pallas import tpu as pltpu

_NEG_INF = float("-inf")
_VMEM_TILE_BUDGET = 24 * 1024 * 1024   # per-step working-set target (bytes)
_VMEM_LIMIT = 32 * 1024 * 1024         # scoped VMEM limit handed to Mosaic


def _round_up(x: int, k: int) -> int:
    return ((x + k - 1) // k) * k


def _importance_kernel(match_ref, ref_ref, row_out_ref, colpart_ref, *acc_scratch,
                       m, n, tm, tn, n_mi, n_ni, n_ki, mask_rows, mask_cols):
    mi = pl.program_id(0)
    ni = pl.program_id(1)
    ki = pl.program_id(2)

    # The (tm, 1) row-importance output block stays resident across the whole
    # (ni, ki) sweep, so it doubles as the running-max accumulator.
    @pl.when((ni == 0) & (ki == 0))
    def _():
        row_out_ref[...] = jnp.full(row_out_ref.shape, _NEG_INF, jnp.float32)

    def scores_tile():
        # scores[i, j] = <ref_i, match_j> -> (tm, tn).  A @ B^T form keeps the
        # contraction on the lane axis of both operands (no XLU transpose).
        return lax.dot_general(
            ref_ref[...], match_ref[...],
            dimension_numbers=(((1,), (1,)), ((), ())),
            preferred_element_type=jnp.float32,
        )

    def epilogue(scores):
        # ---- row importance: max over the n (lane) axis, running over ni ----
        def row_update(s):
            row_out_ref[...] = jnp.maximum(
                row_out_ref[...], jnp.max(s, axis=1, keepdims=True))

        if mask_cols:
            # Zero-padded match rows live only in the last n-tile; mask them
            # there with a 1-D lane iota.  Interior tiles stay select-free.
            @pl.when(ni == n_ni - 1)
            def _():
                valid = lax.broadcasted_iota(jnp.int32, (1, tn), 1) < (n - ni * tn)
                row_update(jnp.where(valid, scores, _NEG_INF))

            @pl.when(ni < n_ni - 1)
            def _():
                row_update(scores)
        else:
            row_update(scores)

        # ---- col importance partial for this m-tile: max over sublanes ------
        def col_update(s):
            colpart_ref[...] = jnp.max(s, axis=0, keepdims=True)

        if mask_rows:
            # Zero-padded ref rows live only in the last m-tile.
            @pl.when(mi == n_mi - 1)
            def _():
                valid = lax.broadcasted_iota(jnp.int32, (tm, 1), 0) < (m - mi * tm)
                col_update(jnp.where(valid, scores, _NEG_INF))

            @pl.when(mi < n_mi - 1)
            def _():
                col_update(scores)
        else:
            col_update(scores)

    if n_ki == 1:
        # Full feature dim in one block: no VMEM accumulator round-trip.
        epilogue(scores_tile())
    else:
        acc_ref = acc_scratch[0]

        @pl.when(ki == 0)
        def _():
            acc_ref[...] = jnp.zeros_like(acc_ref)

        acc_ref[...] += scores_tile()

        @pl.when(ki == n_ki - 1)
        def _():
            epilogue(acc_ref[...])


def full_pairwise_node_importance(match_nodes: jax.Array, ref_nodes: jax.Array,
                                  *, tm: int = 512, tn: int = 1024,
                                  tk: int | None = None,
                                  compute_dtype=None):
    """match_nodes: (n, d), ref_nodes: (m, d) -> (row_imp (m, 1), col_imp (n, 1))."""
    if compute_dtype is not None:
        # e.g. jnp.bfloat16 for native MXU throughput; accumulation stays f32.
        match_nodes = match_nodes.astype(compute_dtype)
        ref_nodes = ref_nodes.astype(compute_dtype)

    n, d = match_nodes.shape
    m, d2 = ref_nodes.shape
    assert d == d2, "feature dims must match"
    assert match_nodes.dtype == ref_nodes.dtype, "inputs must share a dtype"

    itemsize = jnp.dtype(match_nodes.dtype).itemsize
    sub = max(8, 32 // itemsize)        # sublane multiple: f32->8, bf16->16, int8->32

    # ------------------------------ tile selection ---------------------------
    tm = min(_round_up(tm, sub), _round_up(m, sub))
    tn = min(_round_up(tn, 128), _round_up(n, 128))
    tk_full = _round_up(d, 128)
    tk = tk_full if tk is None else min(_round_up(tk, 128), tk_full)

    def footprint(tm_, tn_, tk_):
        return (2 * (tm_ + tn_) * tk_ * itemsize   # double-buffered input tiles
                + 2 * tm_ * tn_ * 4                # f32 score tile (+ acc / masked copy)
                + 4 * (tm_ + tn_))                 # tiny output tiles

    # Shrink tn/tm before tk so the feature dim stays un-split (single ref read
    # per m-tile, no accumulator RMW) as long as the budget allows.
    while footprint(tm, tn, tk) > _VMEM_TILE_BUDGET:
        if tn >= 256 and tn >= tm:
            tn = _round_up(tn // 2, 128)
        elif tm >= 2 * sub:
            tm = _round_up(tm // 2, sub)
        elif tk >= 256:
            tk = _round_up(tk // 2, 128)
        else:
            break

    # v7x megacore: only the m-tile axis is parallel, so prefer an even number
    # of m-tiles when there is more than one (no-op on single-TC v5e/v6e).
    n_mi = pl.cdiv(m, tm)
    if n_mi > 1 and n_mi % 2 == 1:
        tm = min(tm, _round_up(pl.cdiv(m, n_mi + 1), sub))
        n_mi = pl.cdiv(m, tm)

    m_pad = _round_up(m, tm)
    n_pad = _round_up(n, tn)
    d_pad = _round_up(d, tk)
    n_mi = m_pad // tm
    n_ni = n_pad // tn
    n_ki = d_pad // tk

    # Explicit zero-padding: every kernel block is fully in-bounds (OOB block
    # contents are unspecified on TPU / NaN in interpret mode).
    if (m_pad, d_pad) != (m, d):
        ref_nodes = jnp.pad(ref_nodes, ((0, m_pad - m), (0, d_pad - d)))
    if (n_pad, d_pad) != (n, d):
        match_nodes = jnp.pad(match_nodes, ((0, n_pad - n), (0, d_pad - d)))

    mask_rows = m_pad > m   # padded ref rows   -> mask for the col-max
    mask_cols = n_pad > n   # padded match rows -> mask for the row-max

    kernel = functools.partial(
        _importance_kernel, m=m, n=n, tm=tm, tn=tn,
        n_mi=n_mi, n_ni=n_ni, n_ki=n_ki,
        mask_rows=mask_rows, mask_cols=mask_cols)

    cost = pl.CostEstimate(
        flops=2 * m_pad * n_pad * d_pad,
        transcendentals=0,
        bytes_accessed=(itemsize * d_pad * (m_pad * (1 if n_ki == 1 else n_ni)
                                            + n_pad * n_mi)
                        + 4 * (m_pad + n_mi * n_pad)),
    )

    scratch = [pltpu.VMEM((tm, tn), jnp.float32)] if n_ki > 1 else []

    row_pad, col_part = pl.pallas_call(
        kernel,
        out_shape=(
            jax.ShapeDtypeStruct((m_pad, 1), jnp.float32),        # row importance (padded)
            jax.ShapeDtypeStruct((n_mi, 1, n_pad), jnp.float32),  # per-m-tile col partial maxima
        ),
        grid_spec=pltpu.PrefetchScalarGridSpec(
            num_scalar_prefetch=0,
            grid=(n_mi, n_ni, n_ki),
            in_specs=[
                pl.BlockSpec((tn, tk), lambda mi, ni, ki: (ni, ki)),   # match (n, d)
                pl.BlockSpec((tm, tk), lambda mi, ni, ki: (mi, ki)),   # ref   (m, d)
            ],
            out_specs=(
                pl.BlockSpec((tm, 1), lambda mi, ni, ki: (mi, 0)),
                pl.BlockSpec((None, 1, tn), lambda mi, ni, ki: (mi, 0, ni)),
            ),
            scratch_shapes=scratch,
        ),
        compiler_params=pltpu.CompilerParams(
            # m-tiles are independent (disjoint outputs) -> parallel; n and d
            # carry running reductions -> arbitrary.
            dimension_semantics=("parallel", "arbitrary", "arbitrary"),
            vmem_limit_bytes=_VMEM_LIMIT,
        ),
        cost_estimate=cost,
    )(match_nodes, ref_nodes)

    row_imp = row_pad[:m]
    # Combine per-m-tile partial column maxima (tiny XLA reduce), drop padding.
    col_imp = jnp.max(col_part, axis=(0, 1))[:n].reshape(n, 1)
    return row_imp, col_imp


def _reference(match_nodes, ref_nodes):
    scores = ref_nodes @ match_nodes.T                       # (m, n)
    row_imp = jnp.max(scores, axis=1, keepdims=True)         # (m, 1)
    col_imp = jnp.max(scores, axis=0, keepdims=True).T       # (n, 1)
    return row_imp, col_imp


if __name__ == "__main__":
    key = jax.random.PRNGKey(0)
    k1, k2, k3, k4 = jax.random.split(key, 4)

    # Small demo shapes consistent with the module: match (n, d), ref (m, d).
    n, m, d = 16, 8, 32
    match_nodes = jax.random.normal(k1, (n, d), dtype=jnp.float32)
    ref_nodes = jax.random.normal(k2, (m, d), dtype=jnp.float32)

    row_imp, col_imp = full_pairwise_node_importance(match_nodes, ref_nodes)
    jax.block_until_ready((row_imp, col_imp))

    exp_row, exp_col = _reference(match_nodes, ref_nodes)
    assert row_imp.shape == (m, 1) and col_imp.shape == (n, 1)
    assert jnp.allclose(row_imp, exp_row, atol=1e-3, rtol=1e-3)
    assert jnp.allclose(col_imp, exp_col, atol=1e-3, rtol=1e-3)

    # Multi-tile + partial-tile exercise: small tiles, split d (accumulator
    # path), boundary masks on both the m and n axes, even m-tile count.
    n2, m2, d2 = 200, 300, 160
    match2 = jax.random.normal(k3, (n2, d2), dtype=jnp.float32)
    ref2 = jax.random.normal(k4, (m2, d2), dtype=jnp.float32)
    row2, col2 = full_pairwise_node_importance(match2, ref2, tm=64, tn=128, tk=128)
    jax.block_until_ready((row2, col2))
    exp_row2, exp_col2 = _reference(match2, ref2)
    assert row2.shape == (m2, 1) and col2.shape == (n2, 1)
    assert jnp.allclose(row2, exp_row2, atol=1e-3, rtol=1e-3)
    assert jnp.allclose(col2, exp_col2, atol=1e-3, rtol=1e-3)

    print("KERNEL_OK")
</pallas_src>

<mosaic_0001>
module attributes {stable_mosaic.version = 11 : i64} {
  func.func @_importance_kernel(%arg0: i32, %arg1: i32, %arg2: i32, %arg3: memref<128x128xf32, #tpu.memory_space<vmem>>, %arg4: memref<8x128xf32, #tpu.memory_space<vmem>>, %arg5: memref<8x1xf32, #tpu.memory_space<vmem>>, %arg6: memref<1x1x128xf32, #tpu.memory_space<vmem>>) attributes {dimension_semantics = [#tpu.dimension_semantics<parallel>, #tpu.dimension_semantics<arbitrary>, #tpu.dimension_semantics<arbitrary>], iteration_bounds = array<i64: 1, 1, 1>, scalar_prefetch = 0 : i64, scratch_operands = 0 : i64, tpu.core_type = #tpu.core_type<tc>, window_params = [{transform_indices = @transform_0, window_bounds = array<i64: 128, 128>}, {transform_indices = @transform_1, window_bounds = array<i64: 8, 128>}, {transform_indices = @transform_2, window_bounds = array<i64: 8, 1>}, {transform_indices = @transform_3, window_bounds = array<i64: 1, 1, 128>}]} {
    %c0_i32 = arith.constant 0 : i32
    %0 = arith.cmpi eq, %arg1, %c0_i32 : i32
    %c0_i32_0 = arith.constant 0 : i32
    %1 = arith.cmpi eq, %arg2, %c0_i32_0 : i32
    %2 = arith.andi %0, %1 : i1
    %3 = arith.extui %2 : i1 to i32
    %c0_i32_1 = arith.constant 0 : i32
    %4 = arith.cmpi ne, %3, %c0_i32_1 : i32
    scf.if %4 {
      %cst_13 = arith.constant 0xFF800000 : f32
      %19 = vector.broadcast %cst_13 : f32 to vector<8x1xf32>
      %c0_14 = arith.constant 0 : index
      %c0_15 = arith.constant 0 : index
      %20 = vector.load %arg5[%c0_14, %c0_15] : memref<8x1xf32, #tpu.memory_space<vmem>>, vector<8x1xf32>
      tpu.vector_store %arg5[%c0_14, %c0_15], %19 {strides = array<i32>} : memref<8x1xf32, #tpu.memory_space<vmem>>, vector<8x1xf32>,
    } else {
    }
    %c0 = arith.constant 0 : index
    %c0_2 = arith.constant 0 : index
    %5 = vector.load %arg4[%c0, %c0_2] : memref<8x128xf32, #tpu.memory_space<vmem>>, vector<8x128xf32>
    %c0_3 = arith.constant 0 : index
    %c0_4 = arith.constant 0 : index
    %6 = vector.load %arg3[%c0_3, %c0_4] : memref<128x128xf32, #tpu.memory_space<vmem>>, vector<128x128xf32>
    %cst = arith.constant dense<0.000000e+00> : vector<8x128xf32>
    %7 = tpu.matmul %5, %6, %cst {dimension_numbers = #tpu.dot_dimension_numbers<[1], [1], [0], [0], [0, 0, 1, 0], [], []>} : vector<8x128xf32>, vector<128x128xf32>, vector<8x128xf32> -> vector<8x128xf32>
    %c0_i32_5 = arith.constant 0 : i32
    %8 = arith.cmpi eq, %arg1, %c0_i32_5 : i32
    %9 = arith.extui %8 : i1 to i32
    %c0_i32_6 = arith.constant 0 : i32
    %10 = arith.cmpi ne, %9, %c0_i32_6 : i32
    scf.if %10 {
      %19 = tpu.iota {dimensions = array<i32: 1>} : vector<1x128xi32>
      %c128_i32 = arith.constant 128 : i32
      %20 = arith.muli %arg1, %c128_i32 : i32
      %c16_i32 = arith.constant 16 : i32
      %21 = arith.subi %c16_i32, %20 : i32
      %22 = vector.broadcast %21 : i32 to vector<1x128xi32>
      %23 = arith.cmpi slt, %19, %22 : vector<1x128xi32>
      %cst_13 = arith.constant 0xFF800000 : f32
      %24 = vector.shape_cast %23 : vector<1x128xi1> to vector<1x128xi1>
      %25 = vector.broadcast %24 : vector<1x128xi1> to vector<8x128xi1>
      %26 = vector.broadcast %cst_13 : f32 to vector<8x128xf32>
      %27 = arith.select %25, %7, %26 : vector<8x128xi1>, vector<8x128xf32>
      %c0_14 = arith.constant 0 : index
      %c0_15 = arith.constant 0 : index
      %28 = vector.load %arg5[%c0_14, %c0_15] : memref<8x1xf32, #tpu.memory_space<vmem>>, vector<8x1xf32>
      %cst_16 = arith.constant dense<0xFF800000> : vector<8xf32>
      %29 = vector.multi_reduction <maximumf>, %27, %cst_16 [1] : vector<8x128xf32> to vector<8xf32>
      %30 = vector.shape_cast %29 : vector<8xf32> to vector<8x1xf32>
      %31 = arith.maximumf %28, %30 : vector<8x1xf32>
      %c0_17 = arith.constant 0 : index
      %c0_18 = arith.constant 0 : index
      %32 = vector.load %arg5[%c0_17, %c0_18] : memref<8x1xf32, #tpu.memory_space<vmem>>, vector<8x1xf32>
      tpu.vector_store %arg5[%c0_17, %c0_18], %31 {strides = array<i32>} : memref<8x1xf32, #tpu.memory_space<vmem>>, vector<8x1xf32>,
    } else {
    }
    %c0_i32_7 = arith.constant 0 : i32
    %11 = arith.cmpi slt, %arg1, %c0_i32_7 : i32
    %12 = arith.extui %11 : i1 to i32
    %c0_i32_8 = arith.constant 0 : i32
    %13 = arith.cmpi ne, %12, %c0_i32_8 : i32
    scf.if %13 {
      %c0_13 = arith.constant 0 : index
      %c0_14 = arith.constant 0 : index
      %19 = vector.load %arg5[%c0_13, %c0_14] : memref<8x1xf32, #tpu.memory_space<vmem>>, vector<8x1xf32>
      %cst_15 = arith.constant dense<0xFF800000> : vector<8xf32>
      %20 = vector.multi_reduction <maximumf>, %7, %cst_15 [1] : vector<8x128xf32> to vector<8xf32>
      %21 = vector.shape_cast %20 : vector<8xf32> to vector<8x1xf32>
      %22 = arith.maximumf %19, %21 : vector<8x1xf32>
      %c0_16 = arith.constant 0 : index
      %c0_17 = arith.constant 0 : index
      %23 = vector.load %arg5[%c0_16, %c0_17] : memref<8x1xf32, #tpu.memory_space<vmem>>, vector<8x1xf32>
      tpu.vector_store %arg5[%c0_16, %c0_17], %22 {strides = array<i32>} : memref<8x1xf32, #tpu.memory_space<vmem>>, vector<8x1xf32>,
    } else {
    }
    %cst_9 = arith.constant dense<0xFF800000> : vector<128xf32>
    %14 = vector.multi_reduction <maximumf>, %7, %cst_9 [0] : vector<8x128xf32> to vector<128xf32>
    %15 = vector.shape_cast %14 : vector<128xf32> to vector<1x128xf32>
    %c0_10 = arith.constant 0 : index
    %c0_11 = arith.constant 0 : index
    %c0_12 = arith.constant 0 : index
    %16 = vector.load %arg6[%c0_10, %c0_11, %c0_12] : memref<1x1x128xf32, #tpu.memory_space<vmem>>, vector<1x1x128xf32>
    %17 = vector.shape_cast %16 : vector<1x1x128xf32> to vector<1x128xf32>
    %18 = vector.shape_cast %15 : vector<1x128xf32> to vector<1x1x128xf32>
    tpu.vector_store %arg6[%c0_10, %c0_11, %c0_12], %18 {strides = array<i32>} : memref<1x1x128xf32, #tpu.memory_space<vmem>>, vector<1x1x128xf32>,
    return
  }
  func.func @transform_0(%arg0: i32, %arg1: i32, %arg2: i32) -> (i32, i32) {
    %c0_i32 = arith.constant 0 : i32
    return %arg1, %arg2 : i32, i32
  }
  func.func @transform_1(%arg0: i32, %arg1: i32, %arg2: i32) -> (i32, i32) {
    %c0_i32 = arith.constant 0 : i32
    return %arg0, %arg2 : i32, i32
  }
  func.func @transform_2(%arg0: i32, %arg1: i32, %arg2: i32) -> (i32, i32) {
    %c0_i32 = arith.constant 0 : i32
    %c0_i32_0 = arith.constant 0 : i32
    return %arg0, %c0_i32 : i32, i32
  }
  func.func @transform_3(%arg0: i32, %arg1: i32, %arg2: i32) -> (i32, i32, i32) {
    %c0_i32 = arith.constant 0 : i32
    %c0_i32_0 = arith.constant 0 : i32
    return %arg0, %c0_i32, %arg1 : i32, i32, i32
  }
}

</mosaic_0001>

<llo_original>
// kernel: tpu_custom_call.1
$region0: #{tpu_custom_call.1}
  #allocation0 [shape = 'u32[]', space=smem, size = 0x4, offset = 0x4, fixed_abs, tag = 'smem constant byte address 0x4 - core index']
  #allocation1 [shape = 'u32[144,128]{1,0:T(1,128)}', space=vmem, size = 0x12000, scoped, tag = 'internal scratch']
  %s0 = inlined_call_operand.hbm [shape: f32[128,128], index: 0, kind: input, shape index: {}]
  %s1 = inlined_call_operand.hbm [shape: f32[8,128], index: 1, kind: input, shape index: {}]
  %s2 = inlined_call_operand.vmem [shape: f32[8,1], index: 2, kind: output, shape index: {0}]
  %s3 = inlined_call_operand.hbm [shape: f32[1,1,128], index: 3, kind: output, shape index: {1}]
  %4 = xla_tuple %s2, %s3
  %s5 = sld [smem:[#allocation0]]
  $region46: #{tpu_custom_call.1} parent=0
    _
  %s7 = ssub.s32 1, %s5
  %s8 = scalar_select 0, %s7, %s5
  $region1: #{tpu_custom_call.1} parent=0
    #allocation2 [shape = 'u8[65536]{0}', space=vmem, size = 0x10000, scoped, tag = 'input window, operand 0, single buffered']
    #allocation3 [shape = 's32[1]{0}', space=sflag, size = 0x4, scoped, tag = 'scoped memory for tpu_custom_call.1']
    #allocation4 [shape = 's32[1]{0}', space=sflag, size = 0x4, scoped, tag = 'scoped memory for tpu_custom_call.1']
    #allocation5 [shape = 'u8[4096]{0}', space=vmem, size = 0x1000, scoped, tag = 'input window, operand 1, single buffered']
    #allocation6 [shape = 's32[1]{0}', space=sflag, size = 0x4, scoped, tag = 'scoped memory for tpu_custom_call.1']
    #allocation7 [shape = 'u8[512]{0}', space=vmem, size = 0x400, scoped, tag = 'output window, operand 1, single buffered']
    %9 = vsyncpa [#allocation3], 0
    %10 = vsyncpa [#allocation6], 0
    %11 = vsyncpa [#allocation4], 0
    // Predicated region
    $region2: #{tpu_custom_call.1} parent=1 // pred_check
      _
    $region3: #{tpu_custom_call.1} parent=1 // pred_check_branch
      %13 = sbr.rel (0) target = $region5
    $region4: #{tpu_custom_call.1} parent=1 // pred_region
      %s15 = ssub.s32 2048, 2048
      %16 = vsyncadd [#allocation3], %s15
      %s17 = sshll.u32 [#allocation2], 4
      %s18 = int_to_ptr.vmem [resolvable:$true] %s17
      %23 = dma.hbm_to_vmem [thread:$0]  %s0, 2048, %s18, [#allocation3], 128, 128, 8
    $region5: #{tpu_custom_call.1} parent=1 // pred_fallthru
      _
    // Predicated region
    $region6: #{tpu_custom_call.1} parent=1 // pred_check
      _
    $region7: #{tpu_custom_call.1} parent=1 // pred_check_branch
      %25 = sbr.rel (0) target = $region9
    $region8: #{tpu_custom_call.1} parent=1 // pred_region
      %s27 = ssub.s32 128, 128
      %28 = vsyncadd [#allocation6], %s27
      %s30 = sshll.u32 [#allocation5], 4
      %s31 = int_to_ptr.vmem [resolvable:$true] %s30
      %33 = dma.hbm_to_vmem [thread:$0]  %s1, 128, %s31, [#allocation6]
    $region9: #{tpu_custom_call.1} parent=1 // pred_fallthru
      _
    // Predicated region
    $region10: #{tpu_custom_call.1} parent=1 // pred_check
      _
    $region11: #{tpu_custom_call.1} parent=1 // pred_check_branch
      %35 = sbr.rel (0) target = $region13
    $region12: #{tpu_custom_call.1} parent=1 // pred_region
      %36 = dma.done [#allocation3], 2048
    $region13: #{tpu_custom_call.1} parent=1 // pred_fallthru
      _
    // Predicated region
    $region14: #{tpu_custom_call.1} parent=1 // pred_check
      _
    $region15: #{tpu_custom_call.1} parent=1 // pred_check_branch
      %38 = sbr.rel (0) target = $region17
    $region16: #{tpu_custom_call.1} parent=1 // pred_region
      %39 = dma.done [#allocation6], 128
    $region17: #{tpu_custom_call.1} parent=1 // pred_fallthru
      _
    %p40 = scmp.eq.s32.totalorder 0, 0
    %p41 = scmp.eq.s32.totalorder 0, 0
    %p42 = pnand %p40, %p41
    %p43 = pneg %p42
    // Predicated region
    $region18: #{tpu_custom_call.1} parent=1 // pred_check
      _
    $region19: #{tpu_custom_call.1} parent=1 // pred_check_branch
      %45 = sbr.rel (%p42) target = $region21
    $region20: #{tpu_custom_call.1} parent=1 // pred_region
      %vm46 = vcmask 7168
      %47 = vst.msk [vmem:[%s2] sm:$0xff] %vm46, -inf
    $region21: #{tpu_custom_call.1} parent=1 // pred_fallthru
      _
    %v48 = vld [vmem:[#allocation5] sm:$0xff]
    %v49 = vld [vmem:[#allocation2] sm:$0xff]
    %v50 = vld [vmem:[#allocation2 + $0x8] sm:$0xff]
    %v51 = vld [vmem:[#allocation2 + $0x10] sm:$0xff]
    %v52 = vld [vmem:[#allocation2 + $0x18] sm:$0xff]
    %v53 = vld [vmem:[#allocation2 + $0x20] sm:$0xff]
    %v54 = vld [vmem:[#allocation2 + $0x28] sm:$0xff]
    %v55 = vld [vmem:[#allocation2 + $0x30] sm:$0xff]
    %v56 = vld [vmem:[#allocation2 + $0x38] sm:$0xff]
    %v57 = vld [vmem:[#allocation2 + $0x40] sm:$0xff]
    %v58 = vld [vmem:[#allocation2 + $0x48] sm:$0xff]
    %v59 = vld [vmem:[#allocation2 + $0x50] sm:$0xff]
    %v60 = vld [vmem:[#allocation2 + $0x58] sm:$0xff]
    %v61 = vld [vmem:[#allocation2 + $0x60] sm:$0xff]
    %v62 = vld [vmem:[#allocation2 + $0x68] sm:$0xff]
    %v63 = vld [vmem:[#allocation2 + $0x70] sm:$0xff]
    %v64 = vld [vmem:[#allocation2 + $0x78] sm:$0xff]
    %65 = vmatprep.subr.mxu0 0.0
    %66 = vmatpush1.xpose.msra.mxu0 %v64
    %67 = vmatprep.subr.mxu0 0.0
    %68 = vmatpush1.xpose.msra.mxu0 %v63
    %69 = vmatprep.subr.mxu0 0.0
    %70 = vmatpush1.xpose.msra.mxu0 %v62
    %71 = vmatprep.subr.mxu0 0.0
    %72 = vmatpush1.xpose.msra.mxu0 %v61
    %73 = vmatprep.subr.mxu0 0.0
    %74 = vmatpush1.xpose.msra.mxu0 %v60
    %75 = vmatprep.subr.mxu0 0.0
    %76 = vmatpush1.xpose.msra.mxu0 %v59
    %77 = vmatprep.subr.mxu0 0.0
    %78 = vmatpush1.xpose.msra.mxu0 %v58
    %79 = vmatprep.subr.mxu0 0.0
    %80 = vmatpush1.xpose.msra.mxu0 %v57
    %81 = vmatprep.subr.mxu0 0.0
    %82 = vmatpush1.xpose.msra.mxu0 %v56
    %83 = vmatprep.subr.mxu0 0.0
    %84 = vmatpush1.xpose.msra.mxu0 %v55
    %85 = vmatprep.subr.mxu0 0.0
    %86 = vmatpush1.xpose.msra.mxu0 %v54
    %87 = vmatprep.subr.mxu0 0.0
    %88 = vmatpush1.xpose.msra.mxu0 %v53
    %89 = vmatprep.subr.mxu0 0.0
    %90 = vmatpush1.xpose.msra.mxu0 %v52
    %91 = vmatprep.subr.mxu0 0.0
    %92 = vmatpush1.xpose.msra.mxu0 %v51
    %93 = vmatprep.subr.mxu0 0.0
    %94 = vmatpush1.xpose.msra.mxu0 %v50
    %95 = vmatprep.subr.mxu0 0.0
    %96 = vmatpush1.xpose.msra.mxu0 %v49
    %97 = vmatprep.subr.mxu0 0.0
    %98 = vmatpush2.xpose.msra.mxu0 0.0
    %99 = vmatprep.subr.mxu0 0.0
    %100 = vmatpush2.xpose.msra.mxu0 0.0
    %101 = vmatprep.subr.mxu0 0.0
    %102 = vmatpush2.xpose.msra.mxu0 0.0
    %103 = vmatprep.subr.mxu0 0.0
    %104 = vmatpush2.xpose.msra.mxu0 0.0
    %105 = vmatprep.subr.mxu0 0.0
    %106 = vmatpush2.xpose.msra.mxu0 0.0
    %107 = vmatprep.subr.mxu0 0.0
    %108 = vmatpush2.xpose.msra.mxu0 0.0
    %109 = vmatprep.subr.mxu0 0.0
    %110 = vmatpush2.xpose.msra.mxu0 0.0
    %111 = vmatprep.subr.mxu0 0.0
    %112 = vmatpush2.xpose.msra.mxu0 0.0
    %113 = vmatprep.subr.mxu0 0.0
    %114 = vmatpush2.xpose.msra.mxu0 0.0
    %115 = vmatprep.subr.mxu0 0.0
    %116 = vmatpush2.xpose.msra.mxu0 0.0
    %117 = vmatprep.subr.mxu0 0.0
    %118 = vmatpush2.xpose.msra.mxu0 0.0
    %119 = vmatprep.subr.mxu0 0.0
    %120 = vmatpush2.xpose.msra.mxu0 0.0
    %121 = vmatprep.subr.mxu0 0.0
    %122 = vmatpush2.xpose.msra.mxu0 0.0
    %123 = vmatprep.subr.mxu0 0.0
    %124 = vmatpush2.xpose.msra.mxu0 0.0
    %125 = vmatprep.subr.mxu0 0.0
    %126 = vmatpush2.xpose.msra.mxu0 0.0
    %127 = vmatprep.subr.mxu0 0.0
    %128 = vmatpush2.xpose.msra.mxu0 0.0
    %129 = vmatprep.mubr.f32.mxu0 0.0
    %130 = vmatmul.mubr.f32.gmra.mxu0 %v48
    %v131 = vpop.f32.mrf.mxu0
    %v132 = vadd.f32 0.0, %v131
    %v133 = vpop.f32.mrf.mxu0
    %134 = vdwg.mxu0
    // Predicated region
    $region22: #{tpu_custom_call.1} parent=1 // pred_check
      %p135 = pneg %p40
    $region23: #{tpu_custom_call.1} parent=1 // pred_check_branch
      %137 = sbr.rel (%p135) target = $region25
    $region24: #{tpu_custom_call.1} parent=1 // pred_region
      %v138 = vlaneseq
      %v139 = vand.u32 %v138, 127
      %s140 = smul.u32 0, 128
      %s141 = ssub.s32 16, %s140
      %v142 = vstv %s141
      %vm143 = vcmp.lt.s32.totalorder %v139, %v142
      %v144 = vsel %vm143, 1, 0
      %vm145 = vcmp.eq.s32.totalorder %v144, 1
      %v146 = vsel %vm145, %v132, -inf
      %v147 = vld [vmem:[%s2] sm:$0xff]
      %148 = vmax.xlane.f32.xlu0 %v146
      %v149 = vpop.xlane.xlu0 %148
      %v150 = vmax.f32 %v147, %v149
      %vm151 = vcmask 7168
      %152 = vst.msk [vmem:[%s2] sm:$0xff] %vm151, %v150
    $region25: #{tpu_custom_call.1} parent=1 // pred_fallthru
      _
    %p153 = scmp.lt.s32.totalorder 0, 0
    // Predicated region
    $region26: #{tpu_custom_call.1} parent=1 // pred_check
      %p154 = pneg %p153
    $region27: #{tpu_custom_call.1} parent=1 // pred_check_branch
      %156 = sbr.rel (%p154) target = $region29
    $region28: #{tpu_custom_call.1} parent=1 // pred_region
      %v157 = vld [vmem:[%s2] sm:$0xff]
      %158 = vmax.xlane.f32.xlu0 %v132
      %v159 = vpop.xlane.xlu0 %158
      %v160 = vmax.f32 %v157, %v159
      %vm161 = vcmask 7168
      %162 = vst.msk [vmem:[%s2] sm:$0xff] %vm161, %v160
    $region29: #{tpu_custom_call.1} parent=1 // pred_fallthru
      _
    %v163 = vrot.slane %v132, 4
    %v164 = vmax.f32 %v132, %v163
    %v165 = vrot.slane %v164, 2
    %v166 = vmax.f32 %v164, %v165
    %v167 = vrot.slane %v166, 1
    %v168 = vmax.f32 %v166, %v167
    %169 = vst [vmem:[#allocation7] sm:$0x1] %v168
    // Predicated region
    $region30: #{tpu_custom_call.1} parent=1 // pred_check
      _
    $region31: #{tpu_custom_call.1} parent=1 // pred_check_branch
      %171 = sbr.rel (0) target = $region33
    $region32: #{tpu_custom_call.1} parent=1 // pred_region
      _
    $region33: #{tpu_custom_call.1} parent=1 // pred_fallthru
      _
    // Predicated region
    $region34: #{tpu_custom_call.1} parent=1 // pred_check
      _
    $region35: #{tpu_custom_call.1} parent=1 // pred_check_branch
      %173 = sbr.rel (0) target = $region37
    $region36: #{tpu_custom_call.1} parent=1 // pred_region
      %s175 = ssub.s32 16, 16
      %176 = vsyncadd [#allocation4], %s175
      %s178 = sshll.u32 [#allocation7], 4
      %s179 = int_to_ptr.vmem [resolvable:$true] %s178
      %181 = dma.vmem_to_hbm [thread:$0]  %s179, 16, %s3, [#allocation4]
    $region37: #{tpu_custom_call.1} parent=1 // pred_fallthru
      _
    // Predicated region
    $region38: #{tpu_custom_call.1} parent=1 // pred_check
      _
    $region39: #{tpu_custom_call.1} parent=1 // pred_check_branch
      %183 = sbr.rel (0) target = $region41
    $region40: #{tpu_custom_call.1} parent=1 // pred_region
      _
    $region41: #{tpu_custom_call.1} parent=1 // pred_fallthru
      _
    // Predicated region
    $region42: #{tpu_custom_call.1} parent=1 // pred_check
      _
    $region43: #{tpu_custom_call.1} parent=1 // pred_check_branch
      %185 = sbr.rel (0) target = $region45
    $region44: #{tpu_custom_call.1} parent=1 // pred_region
      %186 = dma.done [#allocation4], 16
    $region45: #{tpu_custom_call.1} parent=1 // pred_fallthru
      _
    %187 = vsyncpa [#allocation3], 1
    %188 = vsyncpa [#allocation6], 1
    %189 = vsyncpa [#allocation4], 1

</llo_original>
